<compile_context>
chip_gen: v6e
topology: v6e:2x2x1
jax: 0.10.0
libtpu: 0.0.40
codegen_flags: <defaults>
</compile_context>

<pallas_src>
import functools

import numpy as np
import jax
import jax.numpy as jnp
from jax.experimental import pallas as pl
from jax.experimental.pallas import tpu as pltpu


# ----------------------------------------------------------------------------
# sincos positional embedding (numpy, mirrors get_2d_sincos_pos_embed_flexible)
# ----------------------------------------------------------------------------
def _get_1d_sincos(embed_dim, pos):
    omega = np.arange(embed_dim // 2, dtype=np.float64)
    omega /= embed_dim / 2.0
    omega = 1.0 / 10000 ** omega
    pos = pos.reshape(-1)
    out = np.einsum("m,d->md", pos, omega)
    return np.concatenate([np.sin(out), np.cos(out)], axis=1)


def get_2d_sincos_pos_embed_flexible(embed_dim, grid_size, cls_token=False):
    grid_h = np.arange(grid_size[0], dtype=np.float32)
    grid_w = np.arange(grid_size[1], dtype=np.float32)
    grid = np.meshgrid(grid_w, grid_h)  # w goes first (MAE convention)
    grid = np.stack(grid, axis=0).reshape([2, 1, grid_size[0], grid_size[1]])
    emb_h = _get_1d_sincos(embed_dim // 2, grid[0])
    emb_w = _get_1d_sincos(embed_dim // 2, grid[1])
    emb = np.concatenate([emb_h, emb_w], axis=1)  # (grid_h*grid_w, embed_dim)
    if cls_token:
        emb = np.concatenate([np.zeros([1, embed_dim]), emb], axis=0)
    return emb


# ----------------------------------------------------------------------------
# in-kernel helpers (statistics in f32)
# ----------------------------------------------------------------------------
def _layernorm(x, g, b, eps):
    mu = jnp.mean(x, axis=-1, keepdims=True)
    var = jnp.mean((x - mu) ** 2, axis=-1, keepdims=True)
    return (x - mu) * jax.lax.rsqrt(var + eps) * g + b


def _gelu_tanh(x):
    # tanh-approx GELU (EUP tanh).  TODO(synk): torch.nn.GELU() default is the
    # erf form; tanh approximation deviates by <~1e-3 max abs.
    return 0.5 * x * (1.0 + jnp.tanh(0.7978845608028654 * (x + 0.044715 * x * x * x)))


def _elu(x):
    # torch.nn.ELU(alpha=1.0)
    return jnp.where(x > 0, x, jnp.exp(jnp.minimum(x, 0.0)) - 1.0)


# ----------------------------------------------------------------------------
# Kernel 1: all modalities' backbone + embedding head (grid = modality)
# ----------------------------------------------------------------------------
def embed_kernel(B, T1, x_ref, wb_ref, bb_ref, w1_ref, b1_ref, g_ref, be_ref,
                 w2_ref, b2_ref, tok_ref, pos_ref, o_ref):
    T = T1 - 1

    x2 = x_ref[...]                                           # (B*T1, F) f32
    # TODO(synk): the real backbone_networks are externally injected nn.Modules;
    # modeled here as a per-token Linear projection to backbone_embed_dim.
    h = jnp.dot(x2.astype(jnp.bfloat16), wb_ref[...],
                preferred_element_type=jnp.float32) + bb_ref[...]

    # backbone_embedded: Linear -> BatchNorm1d (train-mode batch statistics
    # over all B*(T+1) tokens of this modality, incl. CLS, eps=1e-5) -> ELU
    h = jnp.dot(h.astype(jnp.bfloat16), w1_ref[...],
                preferred_element_type=jnp.float32) + b1_ref[...]
    mu = jnp.mean(h, axis=0, keepdims=True)
    var = jnp.mean((h - mu) ** 2, axis=0, keepdims=True)
    h = (h - mu) * jax.lax.rsqrt(var + 1e-5) * g_ref[...] + be_ref[...]
    h = _elu(h)

    # drop each sample's CLS row BEFORE the final Linear (sublane slices +
    # concat; avoids computing E-wide outputs for discarded tokens and avoids
    # mid-tile reshapes).
    h = jnp.concatenate([h[b * T1 + 1: b * T1 + 1 + T, :] for b in range(B)],
                        axis=0)                               # (B*T, E)
    h = jnp.dot(h.astype(jnp.bfloat16), w2_ref[...],
                preferred_element_type=jnp.float32) + b2_ref[...]

    add = tok_ref[...] + pos_ref[...]                         # (T, E)
    for b in range(B):
        o_ref[b] = (h[b * T:(b + 1) * T, :] + add).astype(o_ref.dtype)


def embed_forward(x_stacked, mp, pos, B, T1):
    """x_stacked: (M, B*(T+1), F) — one pallas_call for all modalities."""
    M, BT1, F = x_stacked.shape
    Db = mp["wb"].shape[2]
    E = mp["w1"].shape[2]
    T = T1 - 1

    def wspec(shape):
        n = len(shape)

        def imap(m):
            return (m,) + (0,) * n
        return pl.BlockSpec((None,) + shape, imap)

    in_specs = [
        wspec((BT1, F)),                        # per-modality input tokens
        wspec((F, Db)), wspec((1, Db)),         # synthetic backbone linear
        wspec((Db, E)), wspec((1, E)),          # embedded linear 1
        wspec((1, E)), wspec((1, E)),           # BN gamma / beta
        wspec((E, E)), wspec((1, E)),           # embedded linear 2
        wspec((T, E)),                          # modal token
        pl.BlockSpec((T, E), lambda m: (0, 0)),  # shared sincos pos embed
    ]
    # each modality writes its own (B, T, E) slice of the concatenated slab
    out_spec = pl.BlockSpec((B, T, E), lambda m: (0, m, 0))

    return pl.pallas_call(
        functools.partial(embed_kernel, B, T1),
        out_shape=jax.ShapeDtypeStruct((B, M * T, E), jnp.float32),
        grid=(M,),
        in_specs=in_specs,
        out_specs=out_spec,
        compiler_params=pltpu.CompilerParams(
            dimension_semantics=("parallel",),
            vmem_limit_bytes=48 * 1024 * 1024),
    )(x_stacked, mp["wb"], mp["bb"], mp["w1"], mp["b1"], mp["bn_g"], mp["bn_b"],
      mp["w2"], mp["b2"], mp["tok"], pos)


# ----------------------------------------------------------------------------
# Kernel 2: all transformer Blocks + final LayerNorm (+ mean) fused
#           grid = (batch chunks, depth); activation carried in VMEM scratch
# ----------------------------------------------------------------------------
def blocks_kernel(H, fusion, x_ref, g1_ref, be1_ref, wqkv_ref, bqkv_ref,
                  wo_ref, bo_ref, g2_ref, be2_ref, wf1_ref, bf1_ref,
                  wf2_ref, bf2_ref, gf_ref, bfin_ref, o_ref, acc_ref):
    d = pl.program_id(1)

    # activation is carried in VMEM scratch across the depth axis (no HBM
    # round trip between blocks, no duplicated (B, N, E) output writeback).
    @pl.when(d == 0)
    def _():
        acc_ref[...] = x_ref[...]

    x = acc_ref[...]                          # (BB, N, E) f32 residual stream
    B, N, E = x.shape
    hd = E // H
    scale = float(hd) ** -0.5

    x2 = x.reshape(B * N, E)

    # --- attention (timm Block, qkv_bias=True, pre-LN) ---
    xn = _layernorm(x2, g1_ref[...], be1_ref[...], 1e-6)
    # fused QKV projection: one (B*N, E) @ (E, 3E) bf16 matmul, f32 accumulate
    qkv = jnp.dot(xn.astype(jnp.bfloat16), wqkv_ref[...],
                  preferred_element_type=jnp.float32) + bqkv_ref[...]
    q = (qkv[:, :E] * scale).reshape(B, N, E)
    k = qkv[:, E:2 * E].reshape(B, N, E)
    v = qkv[:, 2 * E:].reshape(B, N, E)

    # TODO(synk): a single head-batched einsum ('bnhd,bmhd->bhnm') needs
    # multi-batch-dim dot_general support in Mosaic; heads are statically
    # unrolled instead (bf16 score/AV operands, f32 softmax statistics).
    # TODO(synk): switch to query-tiled online softmax once N reaches ~1-2K.
    head_outs = []
    for h in range(H):
        sl = slice(h * hd, (h + 1) * hd)
        qh = q[:, :, sl].astype(jnp.bfloat16)
        kh = k[:, :, sl].astype(jnp.bfloat16)
        vh = v[:, :, sl].astype(jnp.bfloat16)
        s = jnp.einsum("bnd,bmd->bnm", qh, kh,
                       preferred_element_type=jnp.float32)
        s = s - jnp.max(s, axis=-1, keepdims=True)
        p = jnp.exp(s)
        p = p * pl.reciprocal(jnp.sum(p, axis=-1, keepdims=True), approx=True)
        head_outs.append(jnp.einsum("bnm,bmd->bnd", p.astype(jnp.bfloat16), vh,
                                    preferred_element_type=jnp.float32))
    attn = jnp.concatenate(head_outs, axis=-1).reshape(B * N, E)

    # fused output projection: one (B*N, E) @ (E, E) bf16 matmul
    attn = jnp.dot(attn.astype(jnp.bfloat16), wo_ref[...],
                   preferred_element_type=jnp.float32) + bo_ref[...]
    x2 = x2 + attn

    # --- MLP ---
    xn2 = _layernorm(x2, g2_ref[...], be2_ref[...], 1e-6)
    hm = jnp.dot(xn2.astype(jnp.bfloat16), wf1_ref[...],
                 preferred_element_type=jnp.float32) + bf1_ref[...]
    hm = _gelu_tanh(hm)
    mlp = jnp.dot(hm.astype(jnp.bfloat16), wf2_ref[...],
                  preferred_element_type=jnp.float32) + bf2_ref[...]
    x2 = x2 + mlp

    acc_ref[...] = x2.reshape(B, N, E)

    # --- fused epilogue on the last block: final LayerNorm (+ token mean) ---
    @pl.when(d == pl.num_programs(1) - 1)
    def _():
        xn_f = _layernorm(x2, gf_ref[...], bfin_ref[...], 1e-6).reshape(B, N, E)
        if fusion:
            o_ref[...] = jnp.mean(xn_f, axis=1).astype(o_ref.dtype)
        else:
            o_ref[...] = xn_f.astype(o_ref.dtype)


def blocks_forward(x, bp, fp, H, fusion=True, batch_chunks=1):
    B, N, E = x.shape
    depth = bp["wqkv"].shape[0]
    Mh = bp["wf1"].shape[2]

    # Per perf review: keep batch_chunks=1 on single-TensorCore chips
    # (v5e/v6e) — splitting halves MXU rows and re-streams every block's
    # weights.  Only shard across v7x's two cores when each chunk still feeds
    # the MXU with >=256 rows.
    if B % batch_chunks != 0 or (B // batch_chunks) * N < 256:
        batch_chunks = 1
    BB = B // batch_chunks

    def wspec(shape):
        n = len(shape)

        def imap(b, d):
            return (d,) + (0,) * n
        return pl.BlockSpec((None,) + shape, imap)

    x_spec = pl.BlockSpec((BB, N, E), lambda b, d: (b, 0, 0))
    in_specs = [
        x_spec,
        wspec((1, E)), wspec((1, E)),              # norm1 gamma / beta
        wspec((E, 3 * E)), wspec((1, 3 * E)),      # fused Wqkv, bqkv (bf16/f32)
        wspec((E, E)), wspec((1, E)),              # Wproj, bproj
        wspec((1, E)), wspec((1, E)),              # norm2 gamma / beta
        wspec((E, Mh)), wspec((1, Mh)),            # fc1
        wspec((Mh, E)), wspec((1, E)),             # fc2
        pl.BlockSpec((1, E), lambda b, d: (0, 0)),  # final LN gamma
        pl.BlockSpec((1, E), lambda b, d: (0, 0)),  # final LN beta
    ]
    if fusion:
        out_shape = jax.ShapeDtypeStruct((B, E), jnp.float32)
        out_spec = pl.BlockSpec((BB, E), lambda b, d: (b, 0))
    else:
        out_shape = jax.ShapeDtypeStruct((B, N, E), jnp.float32)
        out_spec = pl.BlockSpec((BB, N, E), lambda b, d: (b, 0, 0))

    return pl.pallas_call(
        functools.partial(blocks_kernel, H, fusion),
        out_shape=out_shape,
        grid=(batch_chunks, depth),                # depth (carry axis) innermost
        in_specs=in_specs,
        out_specs=out_spec,
        scratch_shapes=[pltpu.VMEM((BB, N, E), jnp.float32)],
        compiler_params=pltpu.CompilerParams(
            dimension_semantics=("parallel", "arbitrary"),
            vmem_limit_bytes=48 * 1024 * 1024),
    )(x, bp["g1"], bp["be1"], bp["wqkv"], bp["bqkv"], bp["wo"], bp["bo"],
      bp["g2"], bp["be2"], bp["wf1"], bp["bf1"], bp["wf2"], bp["bf2"],
      fp["g"], fp["b"])


# ----------------------------------------------------------------------------
# full forward (glue in plain JAX)
# ----------------------------------------------------------------------------
def synth_sleepnet_encoder_forward(data, params, fusion=True):
    # stack modalities so a single embed kernel (grid over modality) handles all
    x_stacked = jnp.stack([data[name] for name in params["modal_names"]], axis=0)
    M, B, T1, F = x_stacked.shape
    x_stacked = x_stacked.reshape(M, B * T1, F)
    tokens = embed_forward(x_stacked, params["modal"], params["pos"], B, T1)
    return blocks_forward(tokens, params["blocks"], params["final"],
                          params["H"], fusion=fusion)


# ----------------------------------------------------------------------------
# deterministic parameter init (per-modality / per-block params stacked)
# ----------------------------------------------------------------------------
def init_params(seed, modal_names, F, Db, E, T, H, depth):
    Mh = int(E * 4.0)
    M = len(modal_names)
    key = jax.random.PRNGKey(seed)

    def nk():
        nonlocal key
        key, sub = jax.random.split(key)
        return sub

    def nrm(shape, std=0.02):
        # MXU-facing weights stored bf16 (native MXU dtype on v5e/v6e/v7x);
        # halves weight DMA bytes / VMEM, accumulation stays f32 in-kernel.
        return (std * jax.random.normal(nk(), shape)).astype(jnp.bfloat16)

    zeros = lambda s: jnp.zeros(s, jnp.float32)
    ones = lambda s: jnp.ones(s, jnp.float32)

    params = {
        "modal_names": list(modal_names),
        "H": H,
        "modal": dict(
            wb=nrm((M, F, Db)), bb=zeros((M, 1, Db)),
            w1=nrm((M, Db, E)), b1=zeros((M, 1, E)),
            bn_g=ones((M, 1, E)), bn_b=zeros((M, 1, E)),
            w2=nrm((M, E, E)), b2=zeros((M, 1, E)),
            tok=zeros((M, T, E)),                      # modal_token init = zeros
        ),
        "blocks": dict(
            g1=ones((depth, 1, E)), be1=zeros((depth, 1, E)),
            wqkv=nrm((depth, E, 3 * E)), bqkv=zeros((depth, 1, 3 * E)),
            wo=nrm((depth, E, E)), bo=zeros((depth, 1, E)),
            g2=ones((depth, 1, E)), be2=zeros((depth, 1, E)),
            wf1=nrm((depth, E, Mh)), bf1=zeros((depth, 1, Mh)),
            wf2=nrm((depth, Mh, E)), bf2=zeros((depth, 1, E)),
        ),
        "final": dict(g=ones((1, E)), b=zeros((1, E))),
    }

    # non-trainable sincos pos_embed, grid = (num_backbone_frames, 1)
    pos = get_2d_sincos_pos_embed_flexible(E, (T, 1), cls_token=False)
    params["pos"] = jnp.asarray(pos, jnp.float32)      # (T, E)
    return params


# ----------------------------------------------------------------------------
if __name__ == "__main__":
    B = 2            # batch
    F = 16           # raw per-frame feature dim fed to (synthetic) backbone
    Db = 32          # backbone_embed_dim
    E = 128          # encoder_embed_dim (multiple of 128 -> lane-dense outputs)
    T = 8            # num_backbone_frames (backbone emits T+1 tokens incl. CLS)
    H = 4            # encoder_heads
    depth = 2        # encoder_depths
    modal_names = ["eeg", "eog"]

    params = init_params(0, modal_names, F, Db, E, T, H, depth)

    key = jax.random.PRNGKey(0)
    data = {}
    for name in modal_names:
        key, sub = jax.random.split(key)
        data[name] = jax.random.normal(sub, (B, T + 1, F), jnp.float32)

    out = synth_sleepnet_encoder_forward(data, params, fusion=True)
    out = jax.block_until_ready(out)
    assert out.shape == (B, E) and out.dtype == jnp.float32
    assert bool(jnp.all(jnp.isfinite(out)))
    print("KERNEL_OK")
</pallas_src>

<mosaic_0001>
module attributes {stable_mosaic.version = 11 : i64} {
  func.func @embed_kernel(%arg0: i32, %arg1: memref<1x18x16xf32, #tpu.memory_space<vmem>>, %arg2: memref<1x16x32xbf16, #tpu.memory_space<vmem>>, %arg3: memref<1x1x32xf32, #tpu.memory_space<vmem>>, %arg4: memref<1x32x128xbf16, #tpu.memory_space<vmem>>, %arg5: memref<1x1x128xf32, #tpu.memory_space<vmem>>, %arg6: memref<1x1x128xf32, #tpu.memory_space<vmem>>, %arg7: memref<1x1x128xf32, #tpu.memory_space<vmem>>, %arg8: memref<1x128x128xbf16, #tpu.memory_space<vmem>>, %arg9: memref<1x1x128xf32, #tpu.memory_space<vmem>>, %arg10: memref<1x8x128xf32, #tpu.memory_space<vmem>>, %arg11: memref<8x128xf32, #tpu.memory_space<vmem>>, %arg12: memref<2x8x128xf32, #tpu.memory_space<vmem>>) attributes {dimension_semantics = [#tpu.dimension_semantics<parallel>], iteration_bounds = array<i64: 2>, scalar_prefetch = 0 : i64, scratch_operands = 0 : i64, tpu.core_type = #tpu.core_type<tc>, window_params = [{transform_indices = @transform_0, window_bounds = array<i64: 1, 18, 16>}, {transform_indices = @transform_1, window_bounds = array<i64: 1, 16, 32>}, {transform_indices = @transform_2, window_bounds = array<i64: 1, 1, 32>}, {transform_indices = @transform_3, window_bounds = array<i64: 1, 32, 128>}, {transform_indices = @transform_4, window_bounds = array<i64: 1, 1, 128>}, {transform_indices = @transform_5, window_bounds = array<i64: 1, 1, 128>}, {transform_indices = @transform_6, window_bounds = array<i64: 1, 1, 128>}, {transform_indices = @transform_7, window_bounds = array<i64: 1, 128, 128>}, {transform_indices = @transform_8, window_bounds = array<i64: 1, 1, 128>}, {transform_indices = @transform_9, window_bounds = array<i64: 1, 8, 128>}, {pipeline_mode = #tpu.pipeline_mode<synchronous>, transform_indices = @transform_10, window_bounds = array<i64: 8, 128>}, {transform_indices = @transform_11, window_bounds = array<i64: 2, 8, 128>}]} {
    %c0 = arith.constant 0 : index
    %c0_0 = arith.constant 0 : index
    %c0_1 = arith.constant 0 : index
    %0 = vector.load %arg1[%c0, %c0_0, %c0_1] : memref<1x18x16xf32, #tpu.memory_space<vmem>>, vector<1x18x16xf32>
    %1 = vector.shape_cast %0 : vector<1x18x16xf32> to vector<18x16xf32>
    %2 = arith.truncf %1 : vector<18x16xf32> to vector<18x16xbf16>
    %c0_2 = arith.constant 0 : index
    %c0_3 = arith.constant 0 : index
    %c0_4 = arith.constant 0 : index
    %3 = vector.load %arg2[%c0_2, %c0_3, %c0_4] : memref<1x16x32xbf16, #tpu.memory_space<vmem>>, vector<1x16x32xbf16>
    %4 = vector.shape_cast %3 : vector<1x16x32xbf16> to vector<16x32xbf16>
    %cst = arith.constant dense<0.000000e+00> : vector<18x32xf32>
    %5 = tpu.matmul %2, %4, %cst {dimension_numbers = #tpu.dot_dimension_numbers<[1], [0], [0], [1], [0, 0, 1, 1], [], []>} : vector<18x16xbf16>, vector<16x32xbf16>, vector<18x32xf32> -> vector<18x32xf32>
    %c0_5 = arith.constant 0 : index
    %c0_6 = arith.constant 0 : index
    %c0_7 = arith.constant 0 : index
    %6 = vector.load %arg3[%c0_5, %c0_6, %c0_7] : memref<1x1x32xf32, #tpu.memory_space<vmem>>, vector<1x1x32xf32>
    %7 = vector.shape_cast %6 : vector<1x1x32xf32> to vector<1x32xf32>
    %8 = vector.broadcast %7 : vector<1x32xf32> to vector<18x32xf32>
    %9 = arith.addf %5, %8 : vector<18x32xf32>
    %10 = arith.truncf %9 : vector<18x32xf32> to vector<18x32xbf16>
    %c0_8 = arith.constant 0 : index
    %c0_9 = arith.constant 0 : index
    %c0_10 = arith.constant 0 : index
    %11 = vector.load %arg4[%c0_8, %c0_9, %c0_10] : memref<1x32x128xbf16, #tpu.memory_space<vmem>>, vector<1x32x128xbf16>
    %12 = vector.shape_cast %11 : vector<1x32x128xbf16> to vector<32x128xbf16>
    %cst_11 = arith.constant dense<0.000000e+00> : vector<18x128xf32>
    %13 = tpu.matmul %10, %12, %cst_11 {dimension_numbers = #tpu.dot_dimension_numbers<[1], [0], [0], [1], [0, 0, 1, 1], [], []>} : vector<18x32xbf16>, vector<32x128xbf16>, vector<18x128xf32> -> vector<18x128xf32>
    %c0_12 = arith.constant 0 : index
    %c0_13 = arith.constant 0 : index
    %c0_14 = arith.constant 0 : index
    %14 = vector.load %arg5[%c0_12, %c0_13, %c0_14] : memref<1x1x128xf32, #tpu.memory_space<vmem>>, vector<1x1x128xf32>
    %15 = vector.shape_cast %14 : vector<1x1x128xf32> to vector<1x128xf32>
    %16 = vector.broadcast %15 : vector<1x128xf32> to vector<18x128xf32>
    %17 = arith.addf %13, %16 : vector<18x128xf32>
    %cst_15 = arith.constant dense<0.000000e+00> : vector<128xf32>
    %18 = vector.multi_reduction <add>, %17, %cst_15 [0] : vector<18x128xf32> to vector<128xf32>
    %19 = vector.shape_cast %18 : vector<128xf32> to vector<1x128xf32>
    %cst_16 = arith.constant 1.800000e+01 : f32
    %20 = vector.broadcast %cst_16 : f32 to vector<1x128xf32>
    %21 = arith.divf %19, %20 : vector<1x128xf32>
    %22 = vector.broadcast %21 : vector<1x128xf32> to vector<18x128xf32>
    %23 = arith.subf %17, %22 : vector<18x128xf32>
    %24 = arith.mulf %23, %23 : vector<18x128xf32>
    %cst_17 = arith.constant dense<0.000000e+00> : vector<128xf32>
    %25 = vector.multi_reduction <add>, %24, %cst_17 [0] : vector<18x128xf32> to vector<128xf32>
    %26 = vector.shape_cast %25 : vector<128xf32> to vector<1x128xf32>
    %cst_18 = arith.constant 1.800000e+01 : f32
    %27 = vector.broadcast %cst_18 : f32 to vector<1x128xf32>
    %28 = arith.divf %26, %27 : vector<1x128xf32>
    %29 = vector.broadcast %21 : vector<1x128xf32> to vector<18x128xf32>
    %30 = arith.subf %17, %29 : vector<18x128xf32>
    %cst_19 = arith.constant 9.99999974E-6 : f32
    %31 = vector.broadcast %cst_19 : f32 to vector<1x128xf32>
    %32 = arith.addf %28, %31 : vector<1x128xf32>
    %33 = math.rsqrt %32 : vector<1x128xf32>
    %34 = vector.broadcast %33 : vector<1x128xf32> to vector<18x128xf32>
    %35 = arith.mulf %30, %34 : vector<18x128xf32>
    %c0_20 = arith.constant 0 : index
    %c0_21 = arith.constant 0 : index
    %c0_22 = arith.constant 0 : index
    %36 = vector.load %arg6[%c0_20, %c0_21, %c0_22] : memref<1x1x128xf32, #tpu.memory_space<vmem>>, vector<1x1x128xf32>
    %37 = vector.shape_cast %36 : vector<1x1x128xf32> to vector<1x128xf32>
    %38 = vector.broadcast %37 : vector<1x128xf32> to vector<18x128xf32>
    %39 = arith.mulf %35, %38 : vector<18x128xf32>
    %c0_23 = arith.constant 0 : index
    %c0_24 = arith.constant 0 : index
    %c0_25 = arith.constant 0 : index
    %40 = vector.load %arg7[%c0_23, %c0_24, %c0_25] : memref<1x1x128xf32, #tpu.memory_space<vmem>>, vector<1x1x128xf32>
    %41 = vector.shape_cast %40 : vector<1x1x128xf32> to vector<1x128xf32>
    %42 = vector.broadcast %41 : vector<1x128xf32> to vector<18x128xf32>
    %43 = arith.addf %39, %42 : vector<18x128xf32>
    %cst_26 = arith.constant 0.000000e+00 : f32
    %44 = vector.broadcast %cst_26 : f32 to vector<18x128xf32>
    %45 = arith.cmpf ogt, %43, %44 : vector<18x128xf32>
    %cst_27 = arith.constant 0.000000e+00 : f32
    %46 = vector.broadcast %cst_27 : f32 to vector<18x128xf32>
    %47 = arith.minimumf %43, %46 : vector<18x128xf32>
    %48 = math.exp %47 : vector<18x128xf32>
    %cst_28 = arith.constant 1.000000e+00 : f32
    %49 = vector.broadcast %cst_28 : f32 to vector<18x128xf32>
    %50 = arith.subf %48, %49 : vector<18x128xf32>
    %51 = arith.select %45, %43, %50 : vector<18x128xi1>, vector<18x128xf32>
    %52 = vector.extract_strided_slice %51 {offsets = [1, 0], sizes = [8, 128], strides = [1, 1]} : vector<18x128xf32> to vector<8x128xf32>
    %53 = vector.extract_strided_slice %51 {offsets = [10, 0], sizes = [8, 128], strides = [1, 1]} : vector<18x128xf32> to vector<8x128xf32>
    %54 = tpu.concatenate %52, %53 in 0 : vector<8x128xf32>, vector<8x128xf32> -> vector<16x128xf32>
    %55 = arith.truncf %54 : vector<16x128xf32> to vector<16x128xbf16>
    %c0_29 = arith.constant 0 : index
    %c0_30 = arith.constant 0 : index
    %c0_31 = arith.constant 0 : index
    %56 = vector.load %arg8[%c0_29, %c0_30, %c0_31] : memref<1x128x128xbf16, #tpu.memory_space<vmem>>, vector<1x128x128xbf16>
    %57 = vector.shape_cast %56 : vector<1x128x128xbf16> to vector<128x128xbf16>
    %cst_32 = arith.constant dense<0.000000e+00> : vector<16x128xf32>
    %58 = tpu.matmul %55, %57, %cst_32 {dimension_numbers = #tpu.dot_dimension_numbers<[1], [0], [0], [1], [0, 0, 1, 1], [], []>} : vector<16x128xbf16>, vector<128x128xbf16>, vector<16x128xf32> -> vector<16x128xf32>
    %c0_33 = arith.constant 0 : index
    %c0_34 = arith.constant 0 : index
    %c0_35 = arith.constant 0 : index
    %59 = vector.load %arg9[%c0_33, %c0_34, %c0_35] : memref<1x1x128xf32, #tpu.memory_space<vmem>>, vector<1x1x128xf32>
    %60 = vector.shape_cast %59 : vector<1x1x128xf32> to vector<1x128xf32>
    %61 = vector.broadcast %60 : vector<1x128xf32> to vector<16x128xf32>
    %62 = arith.addf %58, %61 : vector<16x128xf32>
    %c0_36 = arith.constant 0 : index
    %c0_37 = arith.constant 0 : index
    %c0_38 = arith.constant 0 : index
    %63 = vector.load %arg10[%c0_36, %c0_37, %c0_38] : memref<1x8x128xf32, #tpu.memory_space<vmem>>, vector<1x8x128xf32>
    %64 = vector.shape_cast %63 : vector<1x8x128xf32> to vector<8x128xf32>
    %c0_39 = arith.constant 0 : index
    %c0_40 = arith.constant 0 : index
    %65 = vector.load %arg11[%c0_39, %c0_40] : memref<8x128xf32, #tpu.memory_space<vmem>>, vector<8x128xf32>
    %66 = arith.addf %64, %65 : vector<8x128xf32>
    %67 = vector.extract_strided_slice %62 {offsets = [0, 0], sizes = [8, 128], strides = [1, 1]} : vector<16x128xf32> to vector<8x128xf32>
    %68 = arith.addf %67, %66 : vector<8x128xf32>
    %c0_41 = arith.constant 0 : index
    %c0_42 = arith.constant 0 : index
    %c0_43 = arith.constant 0 : index
    %69 = vector.load %arg12[%c0_41, %c0_42, %c0_43] : memref<2x8x128xf32, #tpu.memory_space<vmem>>, vector<1x8x128xf32>
    %70 = vector.shape_cast %69 : vector<1x8x128xf32> to vector<8x128xf32>
    %71 = vector.shape_cast %68 : vector<8x128xf32> to vector<1x8x128xf32>
    tpu.vector_store %arg12[%c0_41, %c0_42, %c0_43], %71 {strides = array<i32>} : memref<2x8x128xf32, #tpu.memory_space<vmem>>, vector<1x8x128xf32>,
    %72 = vector.extract_strided_slice %62 {offsets = [8, 0], sizes = [8, 128], strides = [1, 1]} : vector<16x128xf32> to vector<8x128xf32>
    %73 = arith.addf %72, %66 : vector<8x128xf32>
    %c1 = arith.constant 1 : index
    %c0_44 = arith.constant 0 : index
    %c0_45 = arith.constant 0 : index
    %74 = vector.load %arg12[%c1, %c0_44, %c0_45] : memref<2x8x128xf32, #tpu.memory_space<vmem>>, vector<1x8x128xf32>
    %75 = vector.shape_cast %74 : vector<1x8x128xf32> to vector<8x128xf32>
    %76 = vector.shape_cast %73 : vector<8x128xf32> to vector<1x8x128xf32>
    tpu.vector_store %arg12[%c1, %c0_44, %c0_45], %76 {strides = array<i32>} : memref<2x8x128xf32, #tpu.memory_space<vmem>>, vector<1x8x128xf32>,
    return
  }
  func.func @transform_0(%arg0: i32) -> (i32, i32, i32) {
    %c0_i32 = arith.constant 0 : i32
    %c0_i32_0 = arith.constant 0 : i32
    %c0_i32_1 = arith.constant 0 : i32
    return %arg0, %c0_i32, %c0_i32_0 : i32, i32, i32
  }
  func.func @transform_1(%arg0: i32) -> (i32, i32, i32) {
    %c0_i32 = arith.constant 0 : i32
    %c0_i32_0 = arith.constant 0 : i32
    %c0_i32_1 = arith.constant 0 : i32
    return %arg0, %c0_i32, %c0_i32_0 : i32, i32, i32
  }
  func.func @transform_2(%arg0: i32) -> (i32, i32, i32) {
    %c0_i32 = arith.constant 0 : i32
    %c0_i32_0 = arith.constant 0 : i32
    %c0_i32_1 = arith.constant 0 : i32
    return %arg0, %c0_i32, %c0_i32_0 : i32, i32, i32
  }
  func.func @transform_3(%arg0: i32) -> (i32, i32, i32) {
    %c0_i32 = arith.constant 0 : i32
    %c0_i32_0 = arith.constant 0 : i32
    %c0_i32_1 = arith.constant 0 : i32
    return %arg0, %c0_i32, %c0_i32_0 : i32, i32, i32
  }
  func.func @transform_4(%arg0: i32) -> (i32, i32, i32) {
    %c0_i32 = arith.constant 0 : i32
    %c0_i32_0 = arith.constant 0 : i32
    %c0_i32_1 = arith.constant 0 : i32
    return %arg0, %c0_i32, %c0_i32_0 : i32, i32, i32
  }
  func.func @transform_5(%arg0: i32) -> (i32, i32, i32) {
    %c0_i32 = arith.constant 0 : i32
    %c0_i32_0 = arith.constant 0 : i32
    %c0_i32_1 = arith.constant 0 : i32
    return %arg0, %c0_i32, %c0_i32_0 : i32, i32, i32
  }
  func.func @transform_6(%arg0: i32) -> (i32, i32, i32) {
    %c0_i32 = arith.constant 0 : i32
    %c0_i32_0 = arith.constant 0 : i32
    %c0_i32_1 = arith.constant 0 : i32
    return %arg0, %c0_i32, %c0_i32_0 : i32, i32, i32
  }
  func.func @transform_7(%arg0: i32) -> (i32, i32, i32) {
    %c0_i32 = arith.constant 0 : i32
    %c0_i32_0 = arith.constant 0 : i32
    %c0_i32_1 = arith.constant 0 : i32
    return %arg0, %c0_i32, %c0_i32_0 : i32, i32, i32
  }
  func.func @transform_8(%arg0: i32) -> (i32, i32, i32) {
    %c0_i32 = arith.constant 0 : i32
    %c0_i32_0 = arith.constant 0 : i32
    %c0_i32_1 = arith.constant 0 : i32
    return %arg0, %c0_i32, %c0_i32_0 : i32, i32, i32
  }
  func.func @transform_9(%arg0: i32) -> (i32, i32, i32) {
    %c0_i32 = arith.constant 0 : i32
    %c0_i32_0 = arith.constant 0 : i32
    %c0_i32_1 = arith.constant 0 : i32
    return %arg0, %c0_i32, %c0_i32_0 : i32, i32, i32
  }
  func.func @transform_10(%arg0: i32) -> (i32, i32) {
    %c0_i32 = arith.constant 0 : i32
    %c0_i32_0 = arith.constant 0 : i32
    %c0_i32_1 = arith.constant 0 : i32
    return %c0_i32, %c0_i32_0 : i32, i32
  }
  func.func @transform_11(%arg0: i32) -> (i32, i32, i32) {
    %c0_i32 = arith.constant 0 : i32
    %c0_i32_0 = arith.constant 0 : i32
    %c0_i32_1 = arith.constant 0 : i32
    return %c0_i32, %arg0, %c0_i32_0 : i32, i32, i32
  }
}

</mosaic_0001>

<llo_original>
// kernel: tpu_custom_call.1
$region0: #{tpu_custom_call.1}
  #allocation0 [shape = 'u32[]', space=smem, size = 0x4, offset = 0x4, fixed_abs, tag = 'smem constant byte address 0x4 - core index']
  #allocation1 [shape = 'u32[144,128]{1,0:T(1,128)}', space=vmem, size = 0x12000, scoped, tag = 'internal scratch']
  %s0 = inlined_call_operand.vmem [shape: f32[2,18,16], index: 0, kind: input, shape index: {}]
  %s1 = inlined_call_operand.vmem [shape: bf16[2,16,32], index: 1, kind: input, shape index: {}]
  %s2 = inlined_call_operand.vmem [shape: f32[2,1,32], index: 2, kind: input, shape index: {}]
  %s3 = inlined_call_operand.vmem [shape: bf16[2,32,128], index: 3, kind: input, shape index: {}]
  %s4 = inlined_call_operand.vmem [shape: f32[2,1,128], index: 4, kind: input, shape index: {}]
  %s5 = inlined_call_operand.vmem [shape: f32[2,1,128], index: 5, kind: input, shape index: {}]
  %s6 = inlined_call_operand.vmem [shape: f32[2,1,128], index: 6, kind: input, shape index: {}]
  %s7 = inlined_call_operand.hbm [shape: bf16[2,128,128], index: 7, kind: input, shape index: {}]
  %s8 = inlined_call_operand.vmem [shape: f32[2,1,128], index: 8, kind: input, shape index: {}]
  %s9 = inlined_call_operand.vmem [shape: f32[2,8,128], index: 9, kind: input, shape index: {}]
  %s10 = inlined_call_operand.vmem [shape: f32[8,128], index: 10, kind: input, shape index: {}]
  %s11 = inlined_call_operand.hbm [shape: f32[2,16,128], index: 11, kind: output, shape index: {}]
  %s12 = sld [smem:[#allocation0]]
  $region81: #{tpu_custom_call.1} parent=0
    _
  %s14 = ssub.s32 1, %s12
  %s15 = scalar_select 0, %s14, %s12
  $region1: #{tpu_custom_call.1} parent=0
    #allocation2 [shape = 'u8[65536]{0}', space=vmem, size = 0x10000, scoped, tag = 'input window, operand 7']
    #allocation3 [shape = 's32[2]{0}', space=sflag, size = 0x8, scoped, tag = 'scoped memory for tpu_custom_call.1']
    #allocation4 [shape = 's32[2]{0}', space=sflag, size = 0x8, scoped, tag = 'scoped memory for tpu_custom_call.1']
    #allocation5 [shape = 'u8[16384]{0}', space=vmem, size = 0x4000, scoped, tag = 'output window, operand 0']
    %16 = vsyncpa [#allocation3], 0
    %s17 = scalar_lea.sflag [#allocation3], 1
    %18 = vsyncpa %s17, 0
    %19 = vsyncpa [#allocation4], 0
    %s20 = scalar_lea.sflag [#allocation4], 1
    %21 = vsyncpa %s20, 0
    loop: start=0, step=1, limit=4
    $region2: #{tpu_custom_call.1} parent=1 // loop_pre_header
      _
    $region3: #{tpu_custom_call.1} parent=1 // loop_header
      %s23 = sphi 0, %s27
      %p24 = scmp.ge.s32.totalorder %s23, 4
      %s33 = sphi 0, %s35
      %s36 = sphi 0, %s33
      %s37 = sphi 0, %s36
      %s53 = sphi 0, %s37
      %s59 = sphi 0, %s61
      %s62 = sphi 0, %s59
      %s63 = sphi 0, %s62
      %s79 = sphi 0, %s63
      %s85 = sphi 0, %s87
      %s88 = sphi 0, %s85
      %s89 = sphi 0, %s88
      %s105 = sphi 0, %s89
      %s111 = sphi 0, %s113
      %s114 = sphi 0, %s111
      %s115 = sphi 0, %s114
      %s131 = sphi 0, %s115
      %s137 = sphi 0, %s139
      %s140 = sphi 0, %s137
      %s141 = sphi 0, %s140
      %s157 = sphi 0, %s141
      %s163 = sphi 0, %s165
      %s166 = sphi 0, %s163
      %s167 = sphi 0, %s166
      %s183 = sphi 0, %s167
      %s189 = sphi 0, %s191
      %s192 = sphi 0, %s189
      %s193 = sphi 0, %s192
      %s209 = sphi 0, %s193
      %s215 = sphi 0, %s217
      %s218 = sphi 0, %s215
      %s219 = sphi 0, %s218
      %s235 = sphi 0, %s219
      %s241 = sphi 0, %s243
      %s244 = sphi 0, %s241
      %s245 = sphi 0, %s244
      %s261 = sphi 0, %s245
      %s267 = sphi 0, %s269
      %s270 = sphi 0, %s267
      %s271 = sphi 0, %s270
      %s287 = sphi 0, %s271
      %s291 = sphi 0, %s291
      %s293 = sphi 0, %s291
      %s294 = sphi 0, %s293
      %s308 = sphi 0, %s294
      %s314 = sphi 0, %s316
      %s317 = sphi 0, %s314
      %s318 = sphi 0, %s317
      %s334 = sphi 0, %s318
    $region4: #{tpu_custom_call.1} parent=1 // loop_header_branch
      %26 = sbr.rel (%p24) target = $region8
    $region5: #{tpu_custom_call.1} parent=1 // loop_body
      %s28 = ssub.s32 %s23, 1
      %s29 = ssub.s32 %s23, 2
      %s30 = sadd.s32 %s23, 1
      %s31 = ssub.s32 %s23, %s30
      %p32 = scmp.eq.s32.totalorder %s31, 0
      %s34 = sadd.s32 %s33, 1
      %s35 = scalar_select %p32, %s33, %s34
      %p38 = pneg %p32
      %p39 = scmp.eq.s32.totalorder %s23, 1
      %p40 = por %p38, %p39
      %p41 = scmp.ne.s32.totalorder %s33, %s36
      %p42 = scmp.eq.s32.totalorder %s23, 0
      %p43 = por %p41, %p42
      %p44 = scmp.ne.s32.totalorder %s33, %s36
      %p45 = scmp.eq.s32.totalorder %s28, 1
      %p46 = por %p44, %p45
      %p47 = scmp.ne.s32.totalorder %s36, %s37
      %p48 = scmp.eq.s32.totalorder %s28, 0
      %p49 = por %p47, %p48
      %p50 = scmp.ne.s32.totalorder %s36, %s37
      %p51 = scmp.eq.s32.totalorder %s29, 1
      %p52 = por %p50, %p51
      %p54 = scmp.ne.s32.totalorder %s37, %s53
      %p55 = scmp.eq.s32.totalorder %s29, 0
      %p56 = por %p54, %p55
      %s57 = ssub.s32 %s23, %s30
      %p58 = scmp.eq.s32.totalorder %s57, 0
      %s60 = sadd.s32 %s59, 1
      %s61 = scalar_select %p58, %s59, %s60
      %p64 = pneg %p58
      %p65 = scmp.eq.s32.totalorder %s23, 1
      %p66 = por %p64, %p65
      %p67 = scmp.ne.s32.totalorder %s59, %s62
      %p68 = scmp.eq.s32.totalorder %s23, 0
      %p69 = por %p67, %p68
      %p70 = scmp.ne.s32.totalorder %s59, %s62
      %p71 = scmp.eq.s32.totalorder %s28, 1
      %p72 = por %p70, %p71
      %p73 = scmp.ne.s32.totalorder %s62, %s63
      %p74 = scmp.eq.s32.totalorder %s28, 0
      %p75 = por %p73, %p74
      %p76 = scmp.ne.s32.totalorder %s62, %s63
      %p77 = scmp.eq.s32.totalorder %s29, 1
      %p78 = por %p76, %p77
      %p80 = scmp.ne.s32.totalorder %s63, %s79
      %p81 = scmp.eq.s32.totalorder %s29, 0
      %p82 = por %p80, %p81
      %s83 = ssub.s32 %s23, %s30
      %p84 = scmp.eq.s32.totalorder %s83, 0
      %s86 = sadd.s32 %s85, 1
      %s87 = scalar_select %p84, %s85, %s86
      %p90 = pneg %p84
      %p91 = scmp.eq.s32.totalorder %s23, 1
      %p92 = por %p90, %p91
      %p93 = scmp.ne.s32.totalorder %s85, %s88
      %p94 = scmp.eq.s32.totalorder %s23, 0
      %p95 = por %p93, %p94
      %p96 = scmp.ne.s32.totalorder %s85, %s88
      %p97 = scmp.eq.s32.totalorder %s28, 1
      %p98 = por %p96, %p97
      %p99 = scmp.ne.s32.totalorder %s88, %s89
      %p100 = scmp.eq.s32.totalorder %s28, 0
      %p101 = por %p99, %p100
      %p102 = scmp.ne.s32.totalorder %s88, %s89
      %p103 = scmp.eq.s32.totalorder %s29, 1
      %p104 = por %p102, %p103
      %p106 = scmp.ne.s32.totalorder %s89, %s105
      %p107 = scmp.eq.s32.totalorder %s29, 0
      %p108 = por %p106, %p107
      %s109 = ssub.s32 %s23, %s30
      %p110 = scmp.eq.s32.totalorder %s109, 0
      %s112 = sadd.s32 %s111, 1
      %s113 = scalar_select %p110, %s111, %s112
      %p116 = pneg %p110
      %p117 = scmp.eq.s32.totalorder %s23, 1
      %p118 = por %p116, %p117
      %p119 = scmp.ne.s32.totalorder %s111, %s114
      %p120 = scmp.eq.s32.totalorder %s23, 0
      %p121 = por %p119, %p120
      %p122 = scmp.ne.s32.totalorder %s111, %s114
      %p123 = scmp.eq.s32.totalorder %s28, 1
      %p124 = por %p122, %p123
      %p125 = scmp.ne.s32.totalorder %s114, %s115
      %p126 = scmp.eq.s32.totalorder %s28, 0
      %p127 = por %p125, %p126
      %p128 = scmp.ne.s32.totalorder %s114, %s115
      %p129 = scmp.eq.s32.totalorder %s29, 1
      %p130 = por %p128, %p129
      %p132 = scmp.ne.s32.totalorder %s115, %s131
      %p133 = scmp.eq.s32.totalorder %s29, 0
      %p134 = por %p132, %p133
      %s135 = ssub.s32 %s23, %s30
      %p136 = scmp.eq.s32.totalorder %s135, 0
      %s138 = sadd.s32 %s137, 1
      %s139 = scalar_select %p136, %s137, %s138
      %p142 = pneg %p136
      %p143 = scmp.eq.s32.totalorder %s23, 1
      %p144 = por %p142, %p143
      %p145 = scmp.ne.s32.totalorder %s137, %s140
      %p146 = scmp.eq.s32.totalorder %s23, 0
      %p147 = por %p145, %p146
      %p148 = scmp.ne.s32.totalorder %s137, %s140
      %p149 = scmp.eq.s32.totalorder %s28, 1
      %p150 = por %p148, %p149
      %p151 = scmp.ne.s32.totalorder %s140, %s141
      %p152 = scmp.eq.s32.totalorder %s28, 0
      %p153 = por %p151, %p152
      %p154 = scmp.ne.s32.totalorder %s140, %s141
      %p155 = scmp.eq.s32.totalorder %s29, 1
      %p156 = por %p154, %p155
      %p158 = scmp.ne.s32.totalorder %s141, %s157
      %p159 = scmp.eq.s32.totalorder %s29, 0
      %p160 = por %p158, %p159
      %s161 = ssub.s32 %s23, %s30
      %p162 = scmp.eq.s32.totalorder %s161, 0
      %s164 = sadd.s32 %s163, 1
      %s165 = scalar_select %p162, %s163, %s164
      %p168 = pneg %p162
      %p169 = scmp.eq.s32.totalorder %s23, 1
      %p170 = por %p168, %p169
      %p171 = scmp.ne.s32.totalorder %s163, %s166
      %p172 = scmp.eq.s32.totalorder %s23, 0
      %p173 = por %p171, %p172
      %p174 = scmp.ne.s32.totalorder %s163, %s166
      %p175 = scmp.eq.s32.totalorder %s28, 1
      %p176 = por %p174, %p175
      %p177 = scmp.ne.s32.totalorder %s166, %s167
      %p178 = scmp.eq.s32.totalorder %s28, 0
      %p179 = por %p177, %p178
      %p180 = scmp.ne.s32.totalorder %s166, %s167
      %p181 = scmp.eq.s32.totalorder %s29, 1
      %p182 = por %p180, %p181
      %p184 = scmp.ne.s32.totalorder %s167, %s183
      %p185 = scmp.eq.s32.totalorder %s29, 0
      %p186 = por %p184, %p185
      %s187 = ssub.s32 %s23, %s30
      %p188 = scmp.eq.s32.totalorder %s187, 0
      %s190 = sadd.s32 %s189, 1
      %s191 = scalar_select %p188, %s189, %s190
      %p194 = pneg %p188
      %p195 = scmp.eq.s32.totalorder %s23, 1
      %p196 = por %p194, %p195
      %p197 = scmp.ne.s32.totalorder %s189, %s192
      %p198 = scmp.eq.s32.totalorder %s23, 0
      %p199 = por %p197, %p198
      %p200 = scmp.ne.s32.totalorder %s189, %s192
      %p201 = scmp.eq.s32.totalorder %s28, 1
      %p202 = por %p200, %p201
      %p203 = scmp.ne.s32.totalorder %s192, %s193
      %p204 = scmp.eq.s32.totalorder %s28, 0
      %p205 = por %p203, %p204
      %p206 = scmp.ne.s32.totalorder %s192, %s193
      %p207 = scmp.eq.s32.totalorder %s29, 1
      %p208 = por %p206, %p207
      %p210 = scmp.ne.s32.totalorder %s193, %s209
      %p211 = scmp.eq.s32.totalorder %s29, 0
      %p212 = por %p210, %p211
      %s213 = ssub.s32 %s23, %s30
      %p214 = scmp.eq.s32.totalorder %s213, 0
      %s216 = sadd.s32 %s215, 1
      %s217 = scalar_select %p214, %s215, %s216
      %p220 = pneg %p214
      %p221 = scmp.eq.s32.totalorder %s23, 1
      %p222 = por %p220, %p221
      %p223 = scmp.ne.s32.totalorder %s215, %s218
      %p224 = scmp.eq.s32.totalorder %s23, 0
      %p225 = por %p223, %p224
      %p226 = scmp.ne.s32.totalorder %s215, %s218
      %p227 = scmp.eq.s32.totalorder %s28, 1
      %p228 = por %p226, %p227
      %p229 = scmp.ne.s32.totalorder %s218, %s219
      %p230 = scmp.eq.s32.totalorder %s28, 0
      %p231 = por %p229, %p230
      %p232 = scmp.ne.s32.totalorder %s218, %s219
      %p233 = scmp.eq.s32.totalorder %s29, 1
      %p234 = por %p232, %p233
      %p236 = scmp.ne.s32.totalorder %s219, %s235
      %p237 = scmp.eq.s32.totalorder %s29, 0
      %p238 = por %p236, %p237
      %s239 = ssub.s32 %s23, %s30
      %p240 = scmp.eq.s32.totalorder %s239, 0
      %s242 = sadd.s32 %s241, 1
      %s243 = scalar_select %p240, %s241, %s242
      %p246 = pneg %p240
      %p247 = scmp.eq.s32.totalorder %s23, 1
      %p248 = por %p246, %p247
      %p249 = scmp.ne.s32.totalorder %s241, %s244
      %p250 = scmp.eq.s32.totalorder %s23, 0
      %p251 = por %p249, %p250
      %p252 = scmp.ne.s32.totalorder %s241, %s244
      %p253 = scmp.eq.s32.totalorder %s28, 1
      %p254 = por %p252, %p253
      %p255 = scmp.ne.s32.totalorder %s244, %s245
      %p256 = scmp.eq.s32.totalorder %s28, 0
      %p257 = por %p255, %p256
      %p258 = scmp.ne.s32.totalorder %s244, %s245
      %p259 = scmp.eq.s32.totalorder %s29, 1
      %p260 = por %p258, %p259
      %p262 = scmp.ne.s32.totalorder %s245, %s261
      %p263 = scmp.eq.s32.totalorder %s29, 0
      %p264 = por %p262, %p263
      %s265 = ssub.s32 %s23, %s30
      %p266 = scmp.eq.s32.totalorder %s265, 0
      %s268 = sadd.s32 %s267, 1
      %s269 = scalar_select %p266, %s267, %s268
      %p272 = pneg %p266
      %p273 = scmp.eq.s32.totalorder %s23, 1
      %p274 = por %p272, %p273
      %p275 = scmp.ne.s32.totalorder %s267, %s270
      %p276 = scmp.eq.s32.totalorder %s23, 0
      %p277 = por %p275, %p276
      %p278 = scmp.ne.s32.totalorder %s267, %s270
      %p279 = scmp.eq.s32.totalorder %s28, 1
      %p280 = por %p278, %p279
      %p281 = scmp.ne.s32.totalorder %s270, %s271
      %p282 = scmp.eq.s32.totalorder %s28, 0
      %p283 = por %p281, %p282
      %p284 = scmp.ne.s32.totalorder %s270, %s271
      %p285 = scmp.eq.s32.totalorder %s29, 1
      %p286 = por %p284, %p285
      %p288 = scmp.ne.s32.totalorder %s271, %s287
      %p289 = scmp.eq.s32.totalorder %s29, 0
      %p290 = por %p288, %p289
      %s292 = sadd.s32 %s291, 1
      %p295 = scmp.eq.s32.totalorder %s23, 1
      %p296 = scmp.ne.s32.totalorder %s291, %s293
      %p297 = scmp.eq.s32.totalorder %s23, 0
      %p298 = por %p296, %p297
      %p299 = scmp.ne.s32.totalorder %s291, %s293
      %p300 = scmp.eq.s32.totalorder %s28, 1
      %p301 = por %p299, %p300
      %p302 = scmp.ne.s32.totalorder %s293, %s294
      %p303 = scmp.eq.s32.totalorder %s28, 0
      %p304 = por %p302, %p303
      %p305 = scmp.ne.s32.totalorder %s293, %s294
      %p306 = scmp.eq.s32.totalorder %s29, 1
      %p307 = por %p305, %p306
      %p309 = scmp.ne.s32.totalorder %s294, %s308
      %p310 = scmp.eq.s32.totalorder %s29, 0
      %p311 = por %p309, %p310
      %s312 = ssub.s32 %s23, %s30
      %p313 = scmp.eq.s32.totalorder %s312, 0
      %s315 = sadd.s32 %s314, 1
      %s316 = scalar_select %p313, %s314, %s315
      %p319 = pneg %p313
      %p320 = scmp.eq.s32.totalorder %s23, 1
      %p321 = por %p319, %p320
      %p322 = scmp.ne.s32.totalorder %s314, %s317
      %p323 = scmp.eq.s32.totalorder %s23, 0
      %p324 = por %p322, %p323
      %p325 = scmp.ne.s32.totalorder %s314, %s317
      %p326 = scmp.eq.s32.totalorder %s28, 1
      %p327 = por %p325, %p326
      %p328 = scmp.ne.s32.totalorder %s317, %s318
      %p329 = scmp.eq.s32.totalorder %s28, 0
      %p330 = por %p328, %p329
      %p331 = scmp.ne.s32.totalorder %s317, %s318
      %p332 = scmp.eq.s32.totalorder %s29, 1
      %p333 = por %p331, %p332
      %p335 = scmp.ne.s32.totalorder %s318, %s334
      %p336 = scmp.eq.s32.totalorder %s29, 0
      %p337 = por %p335, %p336
      %p338 = scmp.le.s32.totalorder 1, %s23
      %p339 = scmp.lt.s32.totalorder %s23, 3
      %p340 = pnand %p338, %p339
      %p341 = pneg %p340
      // Predicated region
      $region9: #{tpu_custom_call.1} parent=5 // pred_check
        _
      $region10: #{tpu_custom_call.1} parent=5 // pred_check_branch
        %343 = sbr.rel (%p340) target = $region12
      $region11: #{tpu_custom_call.1} parent=5 // pred_region
        %s344 = ssub.s32 %s23, 1
        // Predicated region
        $region13: #{tpu_custom_call.1} parent=11 // pred_check
          %p345 = pneg %p304
        $region14: #{tpu_custom_call.1} parent=11 // pred_check_branch
          %347 = sbr.rel (%p345) target = $region16
        $region15: #{tpu_custom_call.1} parent=11 // pred_region
          _
        $region16: #{tpu_custom_call.1} parent=11 // pred_fallthru
          _
      $region12: #{tpu_custom_call.1} parent=5 // pred_fallthru
        _
      %p348 = scmp.lt.s32.totalorder %s23, 2
      // Predicated region
      $region17: #{tpu_custom_call.1} parent=5 // pred_check
        %p349 = pneg %p348
      $region18: #{tpu_custom_call.1} parent=5 // pred_check_branch
        %351 = sbr.rel (%p349) target = $region20
      $region19: #{tpu_custom_call.1} parent=5 // pred_region
        // Predicated region
        $region21: #{tpu_custom_call.1} parent=19 // pred_check
          %p352 = pneg %p43
        $region22: #{tpu_custom_call.1} parent=19 // pred_check_branch
          %354 = sbr.rel (%p352) target = $region24
        $region23: #{tpu_custom_call.1} parent=19 // pred_region
          %p355 = scmp.lt.s32.totalorder %s23, 1
          %s356 = scalar_select %p355, %s23, 1
          %s357 = smul.addr %s356, 3
          %s358 = smul.addr %s357, 8
          %s359 = scalar_lea.vmem %s0, %s358
        $region24: #{tpu_custom_call.1} parent=19 // pred_fallthru
          _
        // Predicated region
        $region25: #{tpu_custom_call.1} parent=19 // pred_check
          %p360 = pneg %p69
        $region26: #{tpu_custom_call.1} parent=19 // pred_check_branch
          %362 = sbr.rel (%p360) target = $region28
        $region27: #{tpu_custom_call.1} parent=19 // pred_region
          %p363 = scmp.lt.s32.totalorder %s23, 1
          %s364 = scalar_select %p363, %s23, 1
          %s365 = smul.addr %s364, 2
          %s366 = smul.addr %s365, 4
          %s367 = scalar_lea.vmem %s1, %s366
        $region28: #{tpu_custom_call.1} parent=19 // pred_fallthru
          _
        // Predicated region
        $region29: #{tpu_custom_call.1} parent=19 // pred_check
          %p368 = pneg %p95
        $region30: #{tpu_custom_call.1} parent=19 // pred_check_branch
          %370 = sbr.rel (%p368) target = $region32
        $region31: #{tpu_custom_call.1} parent=19 // pred_region
          %p371 = scmp.lt.s32.totalorder %s23, 1
          %s372 = scalar_select %p371, %s23, 1
          %s373 = scalar_lea.vmem %s2, %s372
        $region32: #{tpu_custom_call.1} parent=19 // pred_fallthru
          _
        // Predicated region
        $region33: #{tpu_custom_call.1} parent=19 // pred_check
          %p374 = pneg %p121
        $region34: #{tpu_custom_call.1} parent=19 // pred_check_branch
          %376 = sbr.rel (%p374) target = $region36
        $region35: #{tpu_custom_call.1} parent=19 // pred_region
          %p377 = scmp.lt.s32.totalorder %s23, 1
          %s378 = scalar_select %p377, %s23, 1
          %s379 = smul.addr %s378, 4
          %s380 = smul.addr %s379, 4
          %s381 = scalar_lea.vmem %s3, %s380
        $region36: #{tpu_custom_call.1} parent=19 // pred_fallthru
          _
        // Predicated region
        $region37: #{tpu_custom_call.1} parent=19 // pred_check
          %p382 = pneg %p147
        $region38: #{tpu_custom_call.1} parent=19 // pred_check_branch
          %384 = sbr.rel (%p382) target = $region40
        $region39: #{tpu_custom_call.1} parent=19 // pred_region
          %p385 = scmp.lt.s32.totalorder %s23, 1
          %s386 = scalar_select %p385, %s23, 1
          %s387 = scalar_lea.vmem %s4, %s386
        $region40: #{tpu_custom_call.1} parent=19 // pred_fallthru
          _
        // Predicated region
        $region41: #{tpu_custom_call.1} parent=19 // pred_check
          %p388 = pneg %p173
        $region42: #{tpu_custom_call.1} parent=19 // pred_check_branch
          %390 = sbr.rel (%p388) target = $region44
        $region43: #{tpu_custom_call.1} parent=19 // pred_region
          %p391 = scmp.lt.s32.totalorder %s23, 1
          %s392 = scalar_select %p391, %s23, 1
          %s393 = scalar_lea.vmem %s5, %s392
        $region44: #{tpu_custom_call.1} parent=19 // pred_fallthru
          _
        // Predicated region
        $region45: #{tpu_custom_call.1} parent=19 // pred_check
          %p394 = pneg %p199
        $region46: #{tpu_custom_call.1} parent=19 // pred_check_branch
          %396 = sbr.rel (%p394) target = $region48
        $region47: #{tpu_custom_call.1} parent=19 // pred_region
          %p397 = scmp.lt.s32.totalorder %s23, 1
          %s398 = scalar_select %p397, %s23, 1
          %s399 = scalar_lea.vmem %s6, %s398
        $region48: #{tpu_custom_call.1} parent=19 // pred_fallthru
          _
        // Predicated region
        $region49: #{tpu_custom_call.1} parent=19 // pred_check
          %p400 = pneg %p225
        $region50: #{tpu_custom_call.1} parent=19 // pred_check_branch
          %402 = sbr.rel (%p400) target = $region52
        $region51: #{tpu_custom_call.1} parent=19 // pred_region
          %s403 = sand.u32 %s215, 1
          %s404 = scalar_lea.sflag [#allocation3], %s403
          %s405 = sand.u32 %s215, 1
          %s406 = smul.addr %s405, 64
          %s407 = scalar_lea.vmem [#allocation2], %s406
          %s409 = ssub.s32 1024, 1024
          %410 = vsyncadd %s404, %s409
          %s411 = smul.addr %s23, 16
          %s412 = smul.addr %s411, 64
          %s413 = scalar_lea.hbm %s7, %s412
          %s414 = sshll.u32 %s407, 4
          %s415 = int_to_ptr.vmem [resolvable:$true] %s414
          %420 = dma.hbm_to_vmem [thread:$0]  %s413, 1024, %s415, %s404, 64, 64, 4
        $region52: #{tpu_custom_call.1} parent=19 // pred_fallthru
          _
        // Predicated region
        $region53: #{tpu_custom_call.1} parent=19 // pred_check
          %p421 = pneg %p251
        $region54: #{tpu_custom_call.1} parent=19 // pred_check_branch
          %423 = sbr.rel (%p421) target = $region56
        $region55: #{tpu_custom_call.1} parent=19 // pred_region
          %p424 = scmp.lt.s32.totalorder %s23, 1
          %s425 = scalar_select %p424, %s23, 1
          %s426 = scalar_lea.vmem %s8, %s425
        $region56: #{tpu_custom_call.1} parent=19 // pred_fallthru
          _
        // Predicated region
        $region57: #{tpu_custom_call.1} parent=19 // pred_check
          %p427 = pneg %p277
        $region58: #{tpu_custom_call.1} parent=19 // pred_check_branch
          %429 = sbr.rel (%p427) target = $region60
        $region59: #{tpu_custom_call.1} parent=19 // pred_region
          %p430 = scmp.lt.s32.totalorder %s23, 1
          %s431 = scalar_select %p430, %s23, 1
          %s432 = smul.addr %s431, 8
          %s433 = scalar_lea.vmem %s9, %s432
        $region60: #{tpu_custom_call.1} parent=19 // pred_fallthru
          _
      $region20: #{tpu_custom_call.1} parent=5 // pred_fallthru
        _
      %p434 = scmp.le.s32.totalorder 1, %s23
      %p435 = scmp.lt.s32.totalorder %s23, 3
      %p436 = pnand %p434, %p435
      %p437 = pneg %p436
      // Predicated region
      $region61: #{tpu_custom_call.1} parent=5 // pred_check
        _
      $region62: #{tpu_custom_call.1} parent=5 // pred_check_branch
        %439 = sbr.rel (%p436) target = $region64
      $region63: #{tpu_custom_call.1} parent=5 // pred_region
        %s440 = ssub.s32 %s23, 1
        %s441 = sand.u32 %s218, 1
        %s442 = scalar_lea.sflag [#allocation3], %s441
        %s443 = sand.u32 %s218, 1
        %s444 = smul.addr %s443, 64
        %s445 = scalar_lea.vmem [#allocation2], %s444
        // Predicated region
        $region65: #{tpu_custom_call.1} parent=63 // pred_check
          %p446 = pneg %p231
        $region66: #{tpu_custom_call.1} parent=63 // pred_check_branch
          %448 = sbr.rel (%p446) target = $region68
        $region67: #{tpu_custom_call.1} parent=63 // pred_region
          %449 = dma.done %s442, 1024
        $region68: #{tpu_custom_call.1} parent=63 // pred_fallthru
          _
        %p450 = scmp.lt.s32.totalorder %s28, 1
        %s451 = scalar_select %p450, %s28, 1
        %s452 = smul.addr %s451, 3
        %s453 = smul.addr %s452, 8
        %s454 = scalar_lea.vmem %s0, %s453
        %p455 = pneg %p49
        %p456 = pneg %p46
        %p457 = scmp.lt.s32.totalorder %s28, 1
        %s458 = scalar_select %p457, %s28, 1
        %s459 = smul.addr %s458, 2
        %s460 = smul.addr %s459, 4
        %s461 = scalar_lea.vmem %s1, %s460
        %p462 = pneg %p75
        %p463 = pneg %p72
        %p464 = scmp.lt.s32.totalorder %s28, 1
        %s465 = scalar_select %p464, %s28, 1
        %s466 = scalar_lea.vmem %s2, %s465
        %p467 = pneg %p101
        %p468 = pneg %p98
        %p469 = scmp.lt.s32.totalorder %s28, 1
        %s470 = scalar_select %p469, %s28, 1
        %s471 = smul.addr %s470, 4
        %s472 = smul.addr %s471, 4
        %s473 = scalar_lea.vmem %s3, %s472
        %p474 = pneg %p127
        %p475 = pneg %p124
        %p476 = scmp.lt.s32.totalorder %s28, 1
        %s477 = scalar_select %p476, %s28, 1
        %s478 = scalar_lea.vmem %s4, %s477
        %p479 = pneg %p153
        %p480 = pneg %p150
        %p481 = scmp.lt.s32.totalorder %s28, 1
        %s482 = scalar_select %p481, %s28, 1
        %s483 = scalar_lea.vmem %s5, %s482
        %p484 = pneg %p179
        %p485 = pneg %p176
        %p486 = scmp.lt.s32.totalorder %s28, 1
        %s487 = scalar_select %p486, %s28, 1
        %s488 = scalar_lea.vmem %s6, %s487
        %p489 = pneg %p205
        %p490 = pneg %p202
        %s491 = sand.u32 %s218, 1
        %s492 = scalar_lea.sflag [#allocation3], %s491
        %s493 = sand.u32 %s218, 1
        %s494 = smul.addr %s493, 64
        %s495 = scalar_lea.vmem [#allocation2], %s494
        %p496 = pneg %p231
        %p497 = pneg %p228
        %p498 = scmp.lt.s32.totalorder %s28, 1
        %s499 = scalar_select %p498, %s28, 1
        %s500 = scalar_lea.vmem %s8, %s499
        %p501 = pneg %p257
        %p502 = pneg %p254
        %p503 = scmp.lt.s32.totalorder %s28, 1
        %s504 = scalar_select %p503, %s28, 1
        %s505 = smul.addr %s504, 8
        %s506 = scalar_lea.vmem %s9, %s505
        %p507 = pneg %p283
        %p508 = pneg %p280
        %p509 = pneg %p304
        %p510 = pneg %p301
        %p511 = pneg %p330
        %p512 = pneg %p327
        %s513 = sand.u32 %s317, 1
        %s514 = scalar_lea.sflag [#allocation4], %s513
        %s515 = sand.u32 %s317, 1
        %s516 = smul.addr %s515, 16
        %s517 = scalar_lea.vmem [#allocation5], %s516
        %p518 = scmp.lt.s32.totalorder %s28, 1
        %s519 = scalar_select %p518, %s28, 1
        %s520 = smul.addr %s519, 3
        %s521 = smul.addr %s520, 8
        %s522 = scalar_lea.vmem %s0, %s521
        %p523 = scmp.lt.s32.totalorder %s28, 1
        %s524 = scalar_select %p523, %s28, 1
        %s525 = smul.addr %s524, 2
        %s526 = smul.addr %s525, 4
        %s527 = scalar_lea.vmem %s1, %s526
        %p528 = scmp.lt.s32.totalorder %s28, 1
        %s529 = scalar_select %p528, %s28, 1
        %s530 = scalar_lea.vmem %s2, %s529
        %p531 = scmp.lt.s32.totalorder %s28, 1
        %s532 = scalar_select %p531, %s28, 1
        %s533 = smul.addr %s532, 4
        %s534 = smul.addr %s533, 4
        %s535 = scalar_lea.vmem %s3, %s534
        %p536 = scmp.lt.s32.totalorder %s28, 1
        %s537 = scalar_select %p536, %s28, 1
        %s538 = scalar_lea.vmem %s4, %s537
        %p539 = scmp.lt.s32.totalorder %s28, 1
        %s540 = scalar_select %p539, %s28, 1
        %s541 = scalar_lea.vmem %s5, %s540
        %p542 = scmp.lt.s32.totalorder %s28, 1
        %s543 = scalar_select %p542, %s28, 1
        %s544 = scalar_lea.vmem %s6, %s543
        %p545 = scmp.lt.s32.totalorder %s28, 1
        %s546 = scalar_select %p545, %s28, 1
        %s547 = scalar_lea.vmem %s8, %s546
        %p548 = scmp.lt.s32.totalorder %s28, 1
        %s549 = scalar_select %p548, %s28, 1
        %s550 = smul.addr %s549, 8
        %s551 = scalar_lea.vmem %s9, %s550
        %v553 = vld [vmem:[%s522] sm:$0xff]
        %v554 = vld [vmem:[%s522 + $0x8] sm:$0xff]
        %v555 = vld [vmem:[%s522 + $0x10] sm:$0x3]
        %v556 = vpack.c.bf16 %v554, %v553
        %v557 = vpack.c.bf16 %v555, %v555
        %v558 = vld [vmem:[%s527] sm:$0xf]
        %v559 = vld [vmem:[%s527 + $0x4] sm:$0xf]
        %v560 = vld [vmem:[%s530] sm:$0x1]
        %v562 = vlaneseq
        %v563 = vshrl.u32 %v562, 7
        %v564 = vsub.s32 0, %v563
        %v565 = vrot.slane %v560, %v564
        %v569 = vunpack.c.l.b16 %v558
        %v570 = vunpack.c.l.b16 %v559
        %v571 = vpack.c.b16 %v570, %v569
        %vm573 = vcmask 130048
        %v575 = vsel %vm573, %v556, 0
        %v578 = vsel %vm573, %v557, 0
        %580 = vmatprep.subr.bf16.mxu0 0
        %581 = vmatpush1.bf16.msra.mxu0 0
        %582 = vmatprep.subr.bf16.mxu0 0
        %583 = vmatpush1.bf16.msra.mxu0 0
        %584 = vmatprep.subr.bf16.mxu0 0
        %585 = vmatpush1.bf16.msra.mxu0 0
        %586 = vmatprep.subr.bf16.mxu0 0
        %587 = vmatpush1.bf16.msra.mxu0 0
        %588 = vmatprep.subr.bf16.mxu0 0
        %589 = vmatpush1.bf16.msra.mxu0 0
        %590 = vmatprep.subr.bf16.mxu0 0
        %591 = vmatpush1.bf16.msra.mxu0 0
        %592 = vmatprep.subr.bf16.mxu0 0
        %593 = vmatpush1.bf16.msra.mxu0 0
        %594 = vmatprep.subr.bf16.mxu0 0
        %595 = vmatpush1.bf16.msra.mxu0 %v571
        %596 = vmatprep.subr.bf16.mxu0 0
        %597 = vmatpush2.bf16.msra.mxu0 0
        %598 = vmatprep.subr.bf16.mxu0 0
        %599 = vmatpush2.bf16.msra.mxu0 0
        %600 = vmatprep.subr.bf16.mxu0 0
        %601 = vmatpush2.bf16.msra.mxu0 0
        %602 = vmatprep.subr.bf16.mxu0 0
        %603 = vmatpush2.bf16.msra.mxu0 0
        %604 = vmatprep.subr.bf16.mxu0 0
        %605 = vmatpush2.bf16.msra.mxu0 0
        %606 = vmatprep.subr.bf16.mxu0 0
        %607 = vmatpush2.bf16.msra.mxu0 0
        %608 = vmatprep.subr.bf16.mxu0 0
        %609 = vmatpush2.bf16.msra.mxu0 0
        %610 = vmatprep.subr.bf16.mxu0 0
        %611 = vmatpush2.bf16.msra.mxu0 0
        %612 = vmatprep.mubr.bf16.mxu0 0
        %613 = vmatmul.mubr.bf16.gmra.mxu0 %v575
        %v614 = vpop.f32.mrf.mxu0
        %v615 = vadd.f32 %v565, %v614
        %v616 = vpop.f32.mrf.mxu0
        %v617 = vpop.f32.mrf.mxu0
        %v618 = vadd.f32 %v565, %v617
        %v619 = vpop.f32.mrf.mxu0
        %620 = vmatprep.mubr.bf16.mxu0 0
        %621 = vmatmul.mubr.bf16.gmra.mxu0 %v578
        %v622 = vpop.f32.mrf.mxu0
        %v623 = vadd.f32 %v565, %v622
        %v624 = vpop.f32.mrf.mxu0
        %v625 = vpop.f32.mrf.mxu0
        %v626 = vpop.f32.mrf.mxu0
        %627 = vdwg.mxu0
        %v628 = vpack.c.bf16 %v618, %v615
        %v629 = vpack.c.bf16 %v623, %v623
        %v630 = vld [vmem:[%s535] sm:$0xf]
        %v631 = vld [vmem:[%s535 + $0x4] sm:$0xf]
        %v632 = vld [vmem:[%s535 + $0x8] sm:$0xf]
        %v633 = vld [vmem:[%s535 + $0xc] sm:$0xf]
        %v634 = vld [vmem:[%s538] sm:$0x1]
        %v636 = vlaneseq
        %v637 = vshrl.u32 %v636, 7
        %v638 = vsub.s32 0, %v637
        %v639 = vrot.slane %v634, %v638
        %v645 = vunpack.c.l.b16 %v630
        %v646 = vunpack.c.l.b16 %v631
        %v647 = vunpack.c.l.b16 %v632
        %v648 = vunpack.c.l.b16 %v633
        %v649 = vpack.c.b16 %v646, %v645
        %v650 = vpack.c.b16 %v648, %v647
        %vm653 = vcmask 261120
        %v655 = vsel %vm653, %v628, 0
        %v658 = vsel %vm653, %v629, 0
        %660 = vmatprep.subr.bf16.mxu0 0
        %661 = vmatpush1.bf16.msra.mxu0 0
        %662 = vmatprep.subr.bf16.mxu0 0
        %663 = vmatpush1.bf16.msra.mxu0 0
        %664 = vmatprep.subr.bf16.mxu0 0
        %665 = vmatpush1.bf16.msra.mxu0 0
        %666 = vmatprep.subr.bf16.mxu0 0
        %667 = vmatpush1.bf16.msra.mxu0 0
        %668 = vmatprep.subr.bf16.mxu0 0
        %669 = vmatpush1.bf16.msra.mxu0 0
        %670 = vmatprep.subr.bf16.mxu0 0
        %671 = vmatpush1.bf16.msra.mxu0 0
        %672 = vmatprep.subr.bf16.mxu0 0
        %673 = vmatpush1.bf16.msra.mxu0 %v650
        %674 = vmatprep.subr.bf16.mxu0 0
        %675 = vmatpush1.bf16.msra.mxu0 %v649
        %676 = vmatprep.subr.bf16.mxu0 0
        %677 = vmatpush2.bf16.msra.mxu0 0
        %678 = vmatprep.subr.bf16.mxu0 0
        %679 = vmatpush2.bf16.msra.mxu0 0
        %680 = vmatprep.subr.bf16.mxu0 0
        %681 = vmatpush2.bf16.msra.mxu0 0
        %682 = vmatprep.subr.bf16.mxu0 0
        %683 = vmatpush2.bf16.msra.mxu0 0
        %684 = vmatprep.subr.bf16.mxu0 0
        %685 = vmatpush2.bf16.msra.mxu0 0
        %686 = vmatprep.subr.bf16.mxu0 0
        %687 = vmatpush2.bf16.msra.mxu0 0
        %688 = vmatprep.subr.bf16.mxu0 0
        %689 = vmatpush2.bf16.msra.mxu0 0
        %690 = vmatprep.subr.bf16.mxu0 0
        %691 = vmatpush2.bf16.msra.mxu0 0
        %692 = vmatprep.mubr.bf16.mxu0 0
        %693 = vmatmul.mubr.bf16.gmra.mxu0 %v655
        %v694 = vpop.f32.mrf.mxu0
        %v695 = vadd.f32 %v639, %v694
        %v696 = vpop.f32.mrf.mxu0
        %v697 = vpop.f32.mrf.mxu0
        %v698 = vadd.f32 %v639, %v697
        %v699 = vpop.f32.mrf.mxu0
        %700 = vmatprep.mubr.bf16.mxu0 0
        %701 = vmatmul.mubr.bf16.gmra.mxu0 %v658
        %v702 = vpop.f32.mrf.mxu0
        %v703 = vadd.f32 %v639, %v702
        %v704 = vpop.f32.mrf.mxu0
        %v705 = vpop.f32.mrf.mxu0
        %v706 = vpop.f32.mrf.mxu0
        %707 = vdwg.mxu0
        %v708 = vadd.f32 %v695, %v698
        %vm709 = vcmask 1041408
        %v710 = vsel %vm709, %v703, 0.0
        %v711 = vadd.f32 %v708, %v710
        %v712 = vrot.slane %v711, 4
        %v713 = vadd.f32 %v711, %v712
        %v714 = vrot.slane %v713, 2
        %v715 = vadd.f32 %v713, %v714
        %v716 = vrot.slane %v715, 1
        %v717 = vadd.f32 %v715, %v716
        %v718 = vrcp.pop 18.0
        %v719 = vmul.f32 %v717, %v718
        %v720 = vsub.f32 %v695, %v719
        %v721 = vsub.f32 %v698, %v719
        %v722 = vsub.f32 %v703, %v719
        %v723 = vmul.f32 %v720, %v720
        %v724 = vmul.f32 %v721, %v721
        %v725 = vmul.f32 %v722, %v722
        %v726 = vadd.f32 %v723, %v724
        %v727 = vsel %vm709, %v725, 0.0
        %v728 = vadd.f32 %v726, %v727
        %v729 = vrot.slane %v728, 4
        %v730 = vadd.f32 %v728, %v729
        %v731 = vrot.slane %v730, 2
        %v732 = vadd.f32 %v730, %v731
        %v733 = vrot.slane %v732, 1
        %v734 = vadd.f32 %v732, %v733
        %v735 = vmul.f32 %v734, %v718
        %v736 = vadd.f32 %v735, 1e-05
        %v737 = vrsqrt.pop %v736
        %v738 = vmul.f32 %v720, %v737
        %v739 = vmul.f32 %v721, %v737
        %v740 = vmul.f32 %v722, %v737
        %v741 = vld [vmem:[%s541] sm:$0x1]
        %v743 = vlaneseq
        %v744 = vshrl.u32 %v743, 7
        %v745 = vsub.s32 0, %v744
        %v746 = vrot.slane %v741, %v745
        %v748 = vmul.f32 %v738, %v746
        %v749 = vmul.f32 %v739, %v746
        %v750 = vmul.f32 %v740, %v746
        %v751 = vld [vmem:[%s544] sm:$0x1]
        %v753 = vlaneseq
        %v754 = vshrl.u32 %v753, 7
        %v755 = vsub.s32 0, %v754
        %v756 = vrot.slane %v751, %v755
        %v758 = vadd.f32 %v748, %v756
        %v759 = vadd.f32 %v749, %v756
        %v760 = vadd.f32 %v750, %v756
        %vm761 = vcmp.gt.f32.partialorder %v758, 0.0
        %vm762 = vcmp.gt.f32.partialorder %v759, 0.0
        %vm763 = vcmp.gt.f32.partialorder %v760, 0.0
        %v764 = vmin.f32 %v758, 0.0
        %v765 = vmin.f32 %v759, 0.0
        %v766 = vmin.f32 %v760, 0.0
        %v767 = vmul.f32 %v764, 1.442695
        %v768 = vpow.pop %v767
        %v769 = vmul.f32 %v765, 1.442695
        %v770 = vpow.pop %v769
        %v771 = vmul.f32 %v766, 1.442695
        %v772 = vpow.pop %v771
        %v773 = vsub.f32 %v768, 1.0
        %v774 = vsub.f32 %v770, 1.0
        %v775 = vsub.f32 %v772, 1.0
        %v776 = vsel %vm761, %v758, %v773
        %v777 = vsel %vm762, %v759, %v774
        %v778 = vsel %vm763, %v760, %v775
        %vm781 = vcmask 1046528
        %v782 = vrot.slane %v776, 1
        %v783 = vrot.slane %v777, 1
        %v784 = vsel %vm781, %v782, %v783
        %vm787 = vcmask 1045504
        %v788 = vrot.slane %v777, 2
        %v789 = vrot.slane %v778, 2
        %v790 = vsel %vm787, %v788, %v789
        %v792 = vpack.c.bf16 %v790, %v784
        %v793 = vld [vmem:[%s445] sm:$0xf]
        %v794 = vld [vmem:[%s445 + $0x4] sm:$0xf]
        %v795 = vld [vmem:[%s445 + $0x8] sm:$0xf]
        %v796 = vld [vmem:[%s445 + $0xc] sm:$0xf]
        %v797 = vld [vmem:[%s445 + $0x10] sm:$0xf]
        %v798 = vld [vmem:[%s445 + $0x14] sm:$0xf]
        %v799 = vld [vmem:[%s445 + $0x18] sm:$0xf]
        %v800 = vld [vmem:[%s445 + $0x1c] sm:$0xf]
        %v801 = vld [vmem:[%s445 + $0x20] sm:$0xf]
        %v802 = vld [vmem:[%s445 + $0x24] sm:$0xf]
        %v803 = vld [vmem:[%s445 + $0x28] sm:$0xf]
        %v804 = vld [vmem:[%s445 + $0x2c] sm:$0xf]
        %v805 = vld [vmem:[%s445 + $0x30] sm:$0xf]
        %v806 = vld [vmem:[%s445 + $0x34] sm:$0xf]
        %v807 = vld [vmem:[%s445 + $0x38] sm:$0xf]
        %v808 = vld [vmem:[%s445 + $0x3c] sm:$0xf]
        %v809 = vld [vmem:[%s547] sm:$0x1]
        %v811 = vlaneseq
        %v812 = vshrl.u32 %v811, 7
        %v813 = vsub.s32 0, %v812
        %v814 = vrot.slane %v809, %v813
        %v832 = vunpack.c.l.b16 %v793
        %v833 = vunpack.c.l.b16 %v794
        %v834 = vunpack.c.l.b16 %v795
        %v835 = vunpack.c.l.b16 %v796
        %v836 = vunpack.c.l.b16 %v797
        %v837 = vunpack.c.l.b16 %v798
        %v838 = vunpack.c.l.b16 %v799
        %v839 = vunpack.c.l.b16 %v800
        %v840 = vunpack.c.l.b16 %v801
        %v841 = vunpack.c.l.b16 %v802
        %v842 = vunpack.c.l.b16 %v803
        %v843 = vunpack.c.l.b16 %v804
        %v844 = vunpack.c.l.b16 %v805
        %v845 = vunpack.c.l.b16 %v806
        %v846 = vunpack.c.l.b16 %v807
        %v847 = vunpack.c.l.b16 %v808
        %v848 = vpack.c.b16 %v833, %v832
        %v849 = vpack.c.b16 %v835, %v834
        %v850 = vpack.c.b16 %v837, %v836
        %v851 = vpack.c.b16 %v839, %v838
        %v852 = vpack.c.b16 %v841, %v840
        %v853 = vpack.c.b16 %v843, %v842
        %v854 = vpack.c.b16 %v845, %v844
        %v855 = vpack.c.b16 %v847, %v846
        %864 = vmatprep.subr.bf16.mxu0 0
        %865 = vmatpush1.bf16.msra.mxu0 %v855
        %866 = vmatprep.subr.bf16.mxu0 0
        %867 = vmatpush1.bf16.msra.mxu0 %v854
        %868 = vmatprep.subr.bf16.mxu0 0
        %869 = vmatpush1.bf16.msra.mxu0 %v853
        %870 = vmatprep.subr.bf16.mxu0 0
        %871 = vmatpush1.bf16.msra.mxu0 %v852
        %872 = vmatprep.subr.bf16.mxu0 0
        %873 = vmatpush1.bf16.msra.mxu0 %v851
        %874 = vmatprep.subr.bf16.mxu0 0
        %875 = vmatpush1.bf16.msra.mxu0 %v850
        %876 = vmatprep.subr.bf16.mxu0 0
        %877 = vmatpush1.bf16.msra.mxu0 %v849
        %878 = vmatprep.subr.bf16.mxu0 0
        %879 = vmatpush1.bf16.msra.mxu0 %v848
        %880 = vmatprep.subr.bf16.mxu0 0
        %881 = vmatpush2.bf16.msra.mxu0 0
        %882 = vmatprep.subr.bf16.mxu0 0
        %883 = vmatpush2.bf16.msra.mxu0 0
        %884 = vmatprep.subr.bf16.mxu0 0
        %885 = vmatpush2.bf16.msra.mxu0 0
        %886 = vmatprep.subr.bf16.mxu0 0
        %887 = vmatpush2.bf16.msra.mxu0 0
        %888 = vmatprep.subr.bf16.mxu0 0
        %889 = vmatpush2.bf16.msra.mxu0 0
        %890 = vmatprep.subr.bf16.mxu0 0
        %891 = vmatpush2.bf16.msra.mxu0 0
        %892 = vmatprep.subr.bf16.mxu0 0
        %893 = vmatpush2.bf16.msra.mxu0 0
        %894 = vmatprep.subr.bf16.mxu0 0
        %895 = vmatpush2.bf16.msra.mxu0 0
        %896 = vmatprep.mubr.bf16.mxu0 0
        %897 = vmatmul.mubr.bf16.gmra.mxu0 %v792
        %v898 = vpop.f32.mrf.mxu0
        %v899 = vadd.f32 %v814, %v898
        %v900 = vpop.f32.mrf.mxu0
        %v901 = vpop.f32.mrf.mxu0
        %v902 = vadd.f32 %v814, %v901
        %v903 = vpop.f32.mrf.mxu0
        %904 = vdwg.mxu0
        %v905 = vld [vmem:[%s551] sm:$0xff]
        %v906 = vld [vmem:[%s10] sm:$0xff]
        %v907 = vadd.f32 %v905, %v906
        %v908 = vadd.f32 %v899, %v907
        %909 = vst [vmem:[%s517] sm:$0xff] %v908
        %v910 = vadd.f32 %v902, %v907
        %s911 = scalar_lea.vmem %s517, 8 [#allocation5]
        %912 = vst [vmem:[%s911] sm:$0xff] %v910
        %s913 = sand.u32 %s317, 1
        %s914 = scalar_lea.sflag [#allocation4], %s913
        %s915 = sand.u32 %s317, 1
        %s916 = smul.addr %s915, 16
        %s917 = scalar_lea.vmem [#allocation5], %s916
        // Predicated region
        $region69: #{tpu_custom_call.1} parent=63 // pred_check
          %p918 = pneg %p327
        $region70: #{tpu_custom_call.1} parent=63 // pred_check_branch
          %920 = sbr.rel (%p918) target = $region72
        $region71: #{tpu_custom_call.1} parent=63 // pred_region
          %s922 = ssub.s32 256, 256
          %923 = vsyncadd %s914, %s922
          %s924 = smul.addr %s28, 128
          %s925 = scalar_lea.hbm %s11, %s924
          %s926 = sshll.u32 %s917, 4
          %s927 = int_to_ptr.vmem [resolvable:$true] %s926
          %932 = dma.vmem_to_hbm [thread:$0]  %s927, 256, %s925, %s914, 128, 256, 8
        $region72: #{tpu_custom_call.1} parent=63 // pred_fallthru
          _
      $region64: #{tpu_custom_call.1} parent=5 // pred_fallthru
        _
      %p933 = scmp.le.s32.totalorder 2, %s23
      // Predicated region
      $region73: #{tpu_custom_call.1} parent=5 // pred_check
        %p934 = pneg %p933
      $region74: #{tpu_custom_call.1} parent=5 // pred_check_branch
        %936 = sbr.rel (%p934) target = $region76
      $region75: #{tpu_custom_call.1} parent=5 // pred_region
        %s937 = ssub.s32 %s23, 2
        // Predicated region
        $region77: #{tpu_custom_call.1} parent=75 // pred_check
          %p938 = pneg %p333
        $region78: #{tpu_custom_call.1} parent=75 // pred_check_branch
          %940 = sbr.rel (%p938) target = $region80
        $region79: #{tpu_custom_call.1} parent=75 // pred_region
          %s941 = sand.u32 %s318, 1
          %s942 = scalar_lea.sflag [#allocation4], %s941
          %s943 = sand.u32 %s318, 1
          %s944 = smul.addr %s943, 16
          %s945 = scalar_lea.vmem [#allocation5], %s944
          %946 = dma.done %s942, 256
        $region80: #{tpu_custom_call.1} parent=75 // pred_fallthru
          _
      $region76: #{tpu_custom_call.1} parent=5 // pred_fallthru
        _
    $region6: #{tpu_custom_call.1} parent=1 // loop_footer
      %s27 = sadd.s32 1, %s23
    $region7: #{tpu_custom_call.1} parent=1 // loop_footer_branch
      %22 = sbr.rel target = $region3
    $region8: #{tpu_custom_call.1} parent=1 // loop_exit
      _
    %947 = vsyncpa [#allocation3], 1
    %s948 = scalar_lea.sflag [#allocation3], 1
    %949 = vsyncpa %s948, 1
    %950 = vsyncpa [#allocation4], 1
    %s951 = scalar_lea.sflag [#allocation4], 1
    %952 = vsyncpa %s951, 1

</llo_original>
